<compile_context>
chip_gen: v6e
topology: v6e:2x2x1
jax: 0.10.0
libtpu: 0.0.40
codegen_flags: <defaults>
</compile_context>

<pallas_src>
import functools

import jax
import jax.numpy as jnp
from jax.experimental import pallas as pl
from jax.experimental.pallas import tpu as pltpu  # noqa: F401


# ------------------------- configuration (small shapes) -------------------------
B = 2            # batch size
NZ = 1           # nz (noise samples per input)
C, H, W = 1, 16, 16
INPUT_DIM = C * H * W     # 256  (stand-in for 784)
NOISE_DIM = 64            # stand-in for 100
H_DIM = 128               # stand-in for 300
Z_DIM = 32
F32 = jnp.float32
BF16 = jnp.bfloat16


def _softplus(x):
    # numerically-stable softplus, matches F.softplus semantics
    return jnp.maximum(x, 0.0) + jnp.log1p(jnp.exp(-jnp.abs(x)))


# --------------------------------- kernel ---------------------------------------
def encoder_kernel(x_ref, nos_ref, eps_ref,
                   w256_ref,   # (INPUT_DIM, 2*H_DIM) bf16 = [ wi | wf1 ]
                   wn_ref,     # (NOISE_DIM, H_DIM)   bf16
                   w128_ref,   # (H_DIM, 2*H_DIM)     bf16 = [ wf2 | whead_pad ]
                   b_ref,      # (8, H_DIM) f32 rows: bi, bn, bf1, bf2, bhead_pad, 0,0,0
                   slab_ref, h_ref,
                   *, nz):
    bi, bn = b_ref[0:1, :], b_ref[1:2, :]
    bf1, bf2, bhead = b_ref[2:3, :], b_ref[3:4, :], b_ref[4:5, :]

    # _forward_inp: x.view(B, input_dim); x = 2*x - 1; Linear + softplus
    x = 2.0 * x_ref[...] - 1.0
    inp = _softplus(
        jnp.dot(x.astype(BF16), w256_ref[:, :H_DIM],
                preferred_element_type=F32) + bi)

    # _forward_nos: Linear + softplus
    nos = _softplus(
        jnp.dot(nos_ref[...].astype(BF16), wn_ref[...],
                preferred_element_type=F32) + bn)

    # inp.unsqueeze(1).expand(-1, nz, -1).view(b*nz, -1)
    if nz == 1:
        inp_rep = inp
    else:
        b = x_ref.shape[0]
        inp_rep = jnp.broadcast_to(inp[:, None, :], (b, nz, H_DIM))
        inp_rep = inp_rep.reshape(b * nz, H_DIM)

    # _forward_all, fc layer 1: single fused K=256 matmul on [inp | nos]
    cat = jnp.concatenate([inp_rep, nos], axis=-1)          # (rows, 2*H_DIM)
    h1 = _softplus(
        jnp.dot(cat.astype(BF16), w256_ref[:, H_DIM:],
                preferred_element_type=F32) + bf1)
    # fc layer 2
    h2 = _softplus(
        jnp.dot(h1.astype(BF16), w128_ref[:, :H_DIM],
                preferred_element_type=F32) + bf2)

    # reparam: fused head padded to 128 output lanes -> [mu | logvar | zeros]
    mulv = (jnp.dot(h2.astype(BF16), w128_ref[:, H_DIM:],
                    preferred_element_type=F32) + bhead)
    mu = mulv[:, :Z_DIM]
    lv = mulv[:, Z_DIM:2 * Z_DIM]
    eps = eps_ref[...]
    z = mu + jnp.exp(0.5 * lv) * eps

    # single lane-dense 128-wide store: [ mu | logvar | z | eps(filler) ]
    slab_ref[...] = jnp.concatenate([mulv[:, :2 * Z_DIM], z, eps], axis=-1)
    # TODO(synk): emit h (and slab) in bf16 once the op is HBM-bound at scale.
    h_ref[...] = h2


# -------------------------------- wrapper ----------------------------------------
@functools.partial(jax.jit, static_argnames=("nz",))
def encoder_forward(x_nchw, noise, eps, packed_params, nz=NZ):
    """x_nchw: [B, C, H, W] f32; noise: [B*nz, noise_dim] f32; eps: [B*nz, z_dim] f32."""
    b = x_nchw.shape[0]
    rows = b * nz
    assert noise.shape[0] == rows and eps.shape[0] == rows

    w256, wn, w128, biases = packed_params
    x_flat = x_nchw.reshape(b, INPUT_DIM).astype(F32)

    out_shapes = (
        jax.ShapeDtypeStruct((rows, 4 * Z_DIM), F32),  # [mu | lv | z | filler]
        jax.ShapeDtypeStruct((rows, H_DIM), F32),      # h
    )
    kern = functools.partial(encoder_kernel, nz=nz)
    # Grid-less call: whole (tiny) arrays are VMEM-resident, no pipeline
    # prologue/epilogue or per-step DMA descriptor overhead.
    # TODO(synk): at large batch, add a leading "parallel" row-tile grid axis
    # (512+ rows/tile) with constant weight index_maps so the ~200 KB of
    # weights stay VMEM-resident; sized against the v7x 64 MiB VMEM budget.
    slab, h = pl.pallas_call(kern, out_shape=out_shapes)(
        x_flat, noise, eps, w256, wn, w128, biases)

    mu = slab[:, 0:Z_DIM]
    lv = slab[:, Z_DIM:2 * Z_DIM]
    z = slab[:, 2 * Z_DIM:3 * Z_DIM]
    return z, mu, lv, h


# --------------------------- deterministic parameter init ------------------------
def init_params(key):
    def linear(key, fan_in, fan_out):
        # mirrors torch nn.Linear default: U(-1/sqrt(fan_in), 1/sqrt(fan_in))
        kw, kb = jax.random.split(key)
        bound = 1.0 / jnp.sqrt(fan_in)
        w = jax.random.uniform(kw, (fan_in, fan_out), F32, -bound, bound)
        b = jax.random.uniform(kb, (1, fan_out), F32, -bound, bound)
        return w, b

    ks = jax.random.split(key, 6)
    wi, bi = linear(ks[0], INPUT_DIM, H_DIM)        # inp_encode
    wn, bn = linear(ks[1], NOISE_DIM, H_DIM)        # nos_encode
    wf1, bf1 = linear(ks[2], 2 * H_DIM, H_DIM)      # fc layer 1 (on concat)
    wf2, bf2 = linear(ks[3], H_DIM, H_DIM)          # fc layer 2
    wmu, bmu = linear(ks[4], H_DIM, Z_DIM)          # reparam: mu
    wlv, blv = linear(ks[5], H_DIM, Z_DIM)          # reparam: logvar
    whead = jnp.concatenate([wmu, wlv], axis=1)     # fused head (H_DIM, 2*Z_DIM)
    bhead = jnp.concatenate([bmu, blv], axis=1)
    return (wi, bi, wn, bn, wf1, bf1, wf2, bf2, whead, bhead)


def pack_params(raw):
    """One-time bf16 cast + slab packing (done at init, not per call)."""
    (wi, bi, wn, bn, wf1, bf1, wf2, bf2, whead, bhead) = raw
    # packing wi with wf1 relies on INPUT_DIM == 2*H_DIM in this config;
    # for other shapes keep wi as its own operand.
    assert wi.shape[0] == wf1.shape[0]
    w256 = jnp.concatenate([wi, wf1], axis=1).astype(BF16)          # (256, 256)
    pad = H_DIM - 2 * Z_DIM
    whead_pad = jnp.pad(whead, ((0, 0), (0, pad)))                  # (128, 128)
    bhead_pad = jnp.pad(bhead, ((0, 0), (0, pad)))                  # (1, 128)
    w128 = jnp.concatenate([wf2, whead_pad], axis=1).astype(BF16)   # (128, 256)
    biases = jnp.concatenate(
        [bi, bn, bf1, bf2, bhead_pad, jnp.zeros((3, H_DIM), F32)], axis=0)  # (8, 128)
    wn_b = wn.astype(BF16)                                          # (64, 128)
    return (w256, wn_b, w128, biases)


# ------------------------------ pure-JAX reference --------------------------------
def encoder_ref(x_nchw, noise, eps, raw_params, nz=NZ):
    (wi, bi, wn, bn, wf1, bf1, wf2, bf2, whead, bhead) = raw_params

    def mm(a, w):  # same bf16-in / f32-accumulate semantics as the kernel
        return jnp.dot(a.astype(BF16), w.astype(BF16), preferred_element_type=F32)

    b = x_nchw.shape[0]
    x = 2.0 * x_nchw.reshape(b, INPUT_DIM).astype(F32) - 1.0
    inp = _softplus(mm(x, wi) + bi)
    nos = _softplus(mm(noise, wn) + bn)
    inp = jnp.repeat(inp, nz, axis=0)
    h = _softplus(mm(jnp.concatenate([inp, nos], axis=-1), wf1) + bf1)
    h = _softplus(mm(h, wf2) + bf2)
    mulv = mm(h, whead) + bhead
    mu = mulv[:, :Z_DIM]
    lv = mulv[:, Z_DIM:]
    z = mu + jnp.exp(0.5 * lv) * eps.astype(F32)
    return z, mu, lv, h


# ----------------------------------- main -----------------------------------------
if __name__ == "__main__":
    key = jax.random.PRNGKey(0)
    k_x, k_n, k_e, k_p = jax.random.split(key, 4)

    # MNIST-like pixels in [0, 1], NCHW layout
    x = jax.random.uniform(k_x, (B, C, H, W), F32)
    noise = jax.random.normal(k_n, (B * NZ, NOISE_DIM), F32)
    # TODO(synk): base class leaves `sample`/`reparam` abstract; we use the
    # standard Gaussian reparameterization with a deterministic external eps.
    eps = jax.random.normal(k_e, (B * NZ, Z_DIM), F32)

    raw_params = init_params(k_p)
    packed_params = pack_params(raw_params)

    z, mu_z, logvar_z, h = encoder_forward(x, noise, eps, packed_params, nz=NZ)
    jax.block_until_ready((z, mu_z, logvar_z, h))

    # correctness check against a reference with matching bf16-matmul precision
    z_r, mu_r, lv_r, h_r = encoder_ref(x, noise, eps, raw_params, nz=NZ)
    for got, ref in ((z, z_r), (mu_z, mu_r), (logvar_z, lv_r), (h, h_r)):
        assert got.shape == ref.shape, "shape mismatch vs reference"
        assert jnp.allclose(got, ref, atol=1e-2, rtol=1e-2), "mismatch vs reference"

    print("KERNEL_OK")
</pallas_src>

<mosaic_0001>
module attributes {stable_mosaic.version = 11 : i64} {
  func.func @encoder_kernel(%arg0: memref<2x256xf32, #tpu.memory_space<vmem>>, %arg1: memref<2x64xf32, #tpu.memory_space<vmem>>, %arg2: memref<2x32xf32, #tpu.memory_space<vmem>>, %arg3: memref<256x256xbf16, #tpu.memory_space<vmem>>, %arg4: memref<64x128xbf16, #tpu.memory_space<vmem>>, %arg5: memref<128x256xbf16, #tpu.memory_space<vmem>>, %arg6: memref<8x128xf32, #tpu.memory_space<vmem>>, %arg7: memref<2x128xf32, #tpu.memory_space<vmem>>, %arg8: memref<2x128xf32, #tpu.memory_space<vmem>>) attributes {dimension_semantics = [], scalar_prefetch = 0 : i64, scratch_operands = 0 : i64, tpu.core_type = #tpu.core_type<tc>} {
    %c0 = arith.constant 0 : index
    %c0_0 = arith.constant 0 : index
    %0 = vector.load %arg6[%c0, %c0_0] : memref<8x128xf32, #tpu.memory_space<vmem>>, vector<1x128xf32>
    %c1 = arith.constant 1 : index
    %c0_1 = arith.constant 0 : index
    %1 = vector.load %arg6[%c1, %c0_1] : memref<8x128xf32, #tpu.memory_space<vmem>>, vector<1x128xf32>
    %c2 = arith.constant 2 : index
    %c0_2 = arith.constant 0 : index
    %2 = vector.load %arg6[%c2, %c0_2] : memref<8x128xf32, #tpu.memory_space<vmem>>, vector<1x128xf32>
    %c3 = arith.constant 3 : index
    %c0_3 = arith.constant 0 : index
    %3 = vector.load %arg6[%c3, %c0_3] : memref<8x128xf32, #tpu.memory_space<vmem>>, vector<1x128xf32>
    %c4 = arith.constant 4 : index
    %c0_4 = arith.constant 0 : index
    %4 = vector.load %arg6[%c4, %c0_4] : memref<8x128xf32, #tpu.memory_space<vmem>>, vector<1x128xf32>
    %c0_5 = arith.constant 0 : index
    %c0_6 = arith.constant 0 : index
    %5 = vector.load %arg0[%c0_5, %c0_6] : memref<2x256xf32, #tpu.memory_space<vmem>>, vector<2x256xf32>
    %cst = arith.constant 2.000000e+00 : f32
    %6 = vector.broadcast %cst : f32 to vector<2x256xf32>
    %7 = arith.mulf %6, %5 : vector<2x256xf32>
    %cst_7 = arith.constant 1.000000e+00 : f32
    %8 = vector.broadcast %cst_7 : f32 to vector<2x256xf32>
    %9 = arith.subf %7, %8 : vector<2x256xf32>
    %10 = arith.truncf %9 : vector<2x256xf32> to vector<2x256xbf16>
    %c0_8 = arith.constant 0 : index
    %c0_9 = arith.constant 0 : index
    %11 = vector.load %arg3[%c0_8, %c0_9] : memref<256x256xbf16, #tpu.memory_space<vmem>>, vector<256x128xbf16>
    %cst_10 = arith.constant dense<0.000000e+00> : vector<2x128xf32>
    %12 = tpu.matmul %10, %11, %cst_10 {dimension_numbers = #tpu.dot_dimension_numbers<[1], [0], [0], [1], [0, 0, 1, 1], [], []>} : vector<2x256xbf16>, vector<256x128xbf16>, vector<2x128xf32> -> vector<2x128xf32>
    %13 = vector.broadcast %0 : vector<1x128xf32> to vector<2x128xf32>
    %14 = arith.addf %12, %13 : vector<2x128xf32>
    %cst_11 = arith.constant 0.000000e+00 : f32
    %15 = vector.broadcast %cst_11 : f32 to vector<2x128xf32>
    %16 = arith.maximumf %14, %15 : vector<2x128xf32>
    %17 = math.absf %14 : vector<2x128xf32>
    %cst_12 = arith.constant 0.000000e+00 : f32
    %18 = vector.broadcast %cst_12 : f32 to vector<2x128xf32>
    %19 = arith.subf %18, %17 : vector<2x128xf32>
    %20 = math.exp %19 : vector<2x128xf32>
    %21 = math.log1p %20 : vector<2x128xf32>
    %22 = arith.addf %16, %21 : vector<2x128xf32>
    %c0_13 = arith.constant 0 : index
    %c0_14 = arith.constant 0 : index
    %23 = vector.load %arg1[%c0_13, %c0_14] : memref<2x64xf32, #tpu.memory_space<vmem>>, vector<2x64xf32>
    %24 = arith.truncf %23 : vector<2x64xf32> to vector<2x64xbf16>
    %c0_15 = arith.constant 0 : index
    %c0_16 = arith.constant 0 : index
    %25 = vector.load %arg4[%c0_15, %c0_16] : memref<64x128xbf16, #tpu.memory_space<vmem>>, vector<64x128xbf16>
    %cst_17 = arith.constant dense<0.000000e+00> : vector<2x128xf32>
    %26 = tpu.matmul %24, %25, %cst_17 {dimension_numbers = #tpu.dot_dimension_numbers<[1], [0], [0], [1], [0, 0, 1, 1], [], []>} : vector<2x64xbf16>, vector<64x128xbf16>, vector<2x128xf32> -> vector<2x128xf32>
    %27 = vector.broadcast %1 : vector<1x128xf32> to vector<2x128xf32>
    %28 = arith.addf %26, %27 : vector<2x128xf32>
    %cst_18 = arith.constant 0.000000e+00 : f32
    %29 = vector.broadcast %cst_18 : f32 to vector<2x128xf32>
    %30 = arith.maximumf %28, %29 : vector<2x128xf32>
    %31 = math.absf %28 : vector<2x128xf32>
    %cst_19 = arith.constant 0.000000e+00 : f32
    %32 = vector.broadcast %cst_19 : f32 to vector<2x128xf32>
    %33 = arith.subf %32, %31 : vector<2x128xf32>
    %34 = math.exp %33 : vector<2x128xf32>
    %35 = math.log1p %34 : vector<2x128xf32>
    %36 = arith.addf %30, %35 : vector<2x128xf32>
    %37 = tpu.concatenate %22, %36 in 1 : vector<2x128xf32>, vector<2x128xf32> -> vector<2x256xf32>
    %38 = arith.truncf %37 : vector<2x256xf32> to vector<2x256xbf16>
    %c0_20 = arith.constant 0 : index
    %c128 = arith.constant 128 : index
    %39 = vector.load %arg3[%c0_20, %c128] : memref<256x256xbf16, #tpu.memory_space<vmem>>, vector<256x128xbf16>
    %cst_21 = arith.constant dense<0.000000e+00> : vector<2x128xf32>
    %40 = tpu.matmul %38, %39, %cst_21 {dimension_numbers = #tpu.dot_dimension_numbers<[1], [0], [0], [1], [0, 0, 1, 1], [], []>} : vector<2x256xbf16>, vector<256x128xbf16>, vector<2x128xf32> -> vector<2x128xf32>
    %41 = vector.broadcast %2 : vector<1x128xf32> to vector<2x128xf32>
    %42 = arith.addf %40, %41 : vector<2x128xf32>
    %cst_22 = arith.constant 0.000000e+00 : f32
    %43 = vector.broadcast %cst_22 : f32 to vector<2x128xf32>
    %44 = arith.maximumf %42, %43 : vector<2x128xf32>
    %45 = math.absf %42 : vector<2x128xf32>
    %cst_23 = arith.constant 0.000000e+00 : f32
    %46 = vector.broadcast %cst_23 : f32 to vector<2x128xf32>
    %47 = arith.subf %46, %45 : vector<2x128xf32>
    %48 = math.exp %47 : vector<2x128xf32>
    %49 = math.log1p %48 : vector<2x128xf32>
    %50 = arith.addf %44, %49 : vector<2x128xf32>
    %51 = arith.truncf %50 : vector<2x128xf32> to vector<2x128xbf16>
    %c0_24 = arith.constant 0 : index
    %c0_25 = arith.constant 0 : index
    %52 = vector.load %arg5[%c0_24, %c0_25] : memref<128x256xbf16, #tpu.memory_space<vmem>>, vector<128x128xbf16>
    %cst_26 = arith.constant dense<0.000000e+00> : vector<2x128xf32>
    %53 = tpu.matmul %51, %52, %cst_26 {dimension_numbers = #tpu.dot_dimension_numbers<[1], [0], [0], [1], [0, 0, 1, 1], [], []>} : vector<2x128xbf16>, vector<128x128xbf16>, vector<2x128xf32> -> vector<2x128xf32>
    %54 = vector.broadcast %3 : vector<1x128xf32> to vector<2x128xf32>
    %55 = arith.addf %53, %54 : vector<2x128xf32>
    %cst_27 = arith.constant 0.000000e+00 : f32
    %56 = vector.broadcast %cst_27 : f32 to vector<2x128xf32>
    %57 = arith.maximumf %55, %56 : vector<2x128xf32>
    %58 = math.absf %55 : vector<2x128xf32>
    %cst_28 = arith.constant 0.000000e+00 : f32
    %59 = vector.broadcast %cst_28 : f32 to vector<2x128xf32>
    %60 = arith.subf %59, %58 : vector<2x128xf32>
    %61 = math.exp %60 : vector<2x128xf32>
    %62 = math.log1p %61 : vector<2x128xf32>
    %63 = arith.addf %57, %62 : vector<2x128xf32>
    %64 = arith.truncf %63 : vector<2x128xf32> to vector<2x128xbf16>
    %c0_29 = arith.constant 0 : index
    %c128_30 = arith.constant 128 : index
    %65 = vector.load %arg5[%c0_29, %c128_30] : memref<128x256xbf16, #tpu.memory_space<vmem>>, vector<128x128xbf16>
    %cst_31 = arith.constant dense<0.000000e+00> : vector<2x128xf32>
    %66 = tpu.matmul %64, %65, %cst_31 {dimension_numbers = #tpu.dot_dimension_numbers<[1], [0], [0], [1], [0, 0, 1, 1], [], []>} : vector<2x128xbf16>, vector<128x128xbf16>, vector<2x128xf32> -> vector<2x128xf32>
    %67 = vector.broadcast %4 : vector<1x128xf32> to vector<2x128xf32>
    %68 = arith.addf %66, %67 : vector<2x128xf32>
    %69 = vector.extract_strided_slice %68 {offsets = [0, 0], sizes = [2, 32], strides = [1, 1]} : vector<2x128xf32> to vector<2x32xf32>
    %70 = vector.extract_strided_slice %68 {offsets = [0, 32], sizes = [2, 32], strides = [1, 1]} : vector<2x128xf32> to vector<2x32xf32>
    %c0_32 = arith.constant 0 : index
    %c0_33 = arith.constant 0 : index
    %71 = vector.load %arg2[%c0_32, %c0_33] : memref<2x32xf32, #tpu.memory_space<vmem>>, vector<2x32xf32>
    %cst_34 = arith.constant 5.000000e-01 : f32
    %72 = vector.broadcast %cst_34 : f32 to vector<2x32xf32>
    %73 = arith.mulf %72, %70 : vector<2x32xf32>
    %74 = math.exp %73 : vector<2x32xf32>
    %75 = arith.mulf %74, %71 : vector<2x32xf32>
    %76 = arith.addf %69, %75 : vector<2x32xf32>
    %77 = vector.extract_strided_slice %68 {offsets = [0, 0], sizes = [2, 64], strides = [1, 1]} : vector<2x128xf32> to vector<2x64xf32>
    %78 = tpu.concatenate %77, %76, %71 in 1 : vector<2x64xf32>, vector<2x32xf32>, vector<2x32xf32> -> vector<2x128xf32>
    %c0_35 = arith.constant 0 : index
    %c0_36 = arith.constant 0 : index
    %79 = vector.load %arg7[%c0_35, %c0_36] : memref<2x128xf32, #tpu.memory_space<vmem>>, vector<2x128xf32>
    tpu.vector_store %arg7[%c0_35, %c0_36], %78 {strides = array<i32>} : memref<2x128xf32, #tpu.memory_space<vmem>>, vector<2x128xf32>,
    %c0_37 = arith.constant 0 : index
    %c0_38 = arith.constant 0 : index
    %80 = vector.load %arg8[%c0_37, %c0_38] : memref<2x128xf32, #tpu.memory_space<vmem>>, vector<2x128xf32>
    tpu.vector_store %arg8[%c0_37, %c0_38], %63 {strides = array<i32>} : memref<2x128xf32, #tpu.memory_space<vmem>>, vector<2x128xf32>,
    return
  }
}

</mosaic_0001>

<llo_original>
// kernel: encoder_forward.1
$region0: #{encoder_forward.1}
  #allocation0 [shape = 'u32[]', space=smem, size = 0x4, offset = 0x4, fixed_abs, tag = 'smem constant byte address 0x4 - core index']
  #allocation1 [shape = 'u32[144,128]{1,0:T(1,128)}', space=vmem, size = 0x12000, scoped, tag = 'internal scratch']
  %s0 = inlined_call_operand.vmem [shape: f32[2,256], index: 0, kind: input, shape index: {}]
  %s1 = inlined_call_operand.vmem [shape: f32[2,64], index: 1, kind: input, shape index: {}]
  %s2 = inlined_call_operand.hbm [shape: f32[2,32], index: 2, kind: input, shape index: {}]
  %s3 = inlined_call_operand.hbm [shape: bf16[256,256], index: 3, kind: input, shape index: {}]
  %s4 = inlined_call_operand.vmem [shape: bf16[64,128], index: 4, kind: input, shape index: {}]
  %s5 = inlined_call_operand.hbm [shape: bf16[128,256], index: 5, kind: input, shape index: {}]
  %s6 = inlined_call_operand.vmem [shape: f32[8,128], index: 6, kind: input, shape index: {}]
  %s7 = inlined_call_operand.vmem [shape: f32[2,128], index: 7, kind: output, shape index: {0}]
  %s8 = inlined_call_operand.hbm [shape: f32[2,128], index: 8, kind: output, shape index: {1}]
  %9 = xla_tuple %s7, %s8
  %s10 = sld [smem:[#allocation0]]
  $region58: #{encoder_forward.1} parent=0
    _
  %s12 = ssub.s32 1, %s10
  %s13 = scalar_select 0, %s12, %s10
  $region1: #{encoder_forward.1} parent=0
    #allocation2 [shape = 'u8[1024]{0}', space=vmem, size = 0x400, scoped, tag = 'input window, operand 2, single buffered']
    #allocation3 [shape = 's32[1]{0}', space=sflag, size = 0x4, scoped, tag = 'scoped memory for encoder_forward.1']
    #allocation4 [shape = 's32[1]{0}', space=sflag, size = 0x4, scoped, tag = 'scoped memory for encoder_forward.1']
    #allocation5 [shape = 'u8[131072]{0}', space=vmem, size = 0x20000, scoped, tag = 'input window, operand 3, single buffered']
    #allocation6 [shape = 's32[1]{0}', space=sflag, size = 0x4, scoped, tag = 'scoped memory for encoder_forward.1']
    #allocation7 [shape = 'u8[65536]{0}', space=vmem, size = 0x10000, scoped, tag = 'input window, operand 5, single buffered']
    #allocation8 [shape = 'u8[1024]{0}', space=vmem, size = 0x400, scoped, tag = 'output window, operand 1, single buffered']
    %14 = vsyncpa [#allocation3], 0
    %15 = vsyncpa [#allocation6], 0
    %16 = vsyncpa [#allocation4], 0
    // Predicated region
    $region2: #{encoder_forward.1} parent=1 // pred_check
      _
    $region3: #{encoder_forward.1} parent=1 // pred_check_branch
      %18 = sbr.rel (0) target = $region5
    $region4: #{encoder_forward.1} parent=1 // pred_region
      _
    $region5: #{encoder_forward.1} parent=1 // pred_fallthru
      _
    // Predicated region
    $region6: #{encoder_forward.1} parent=1 // pred_check
      _
    $region7: #{encoder_forward.1} parent=1 // pred_check_branch
      %20 = sbr.rel (0) target = $region9
    $region8: #{encoder_forward.1} parent=1 // pred_region
      _
    $region9: #{encoder_forward.1} parent=1 // pred_fallthru
      _
    // Predicated region
    $region10: #{encoder_forward.1} parent=1 // pred_check
      _
    $region11: #{encoder_forward.1} parent=1 // pred_check_branch
      %22 = sbr.rel (0) target = $region13
    $region12: #{encoder_forward.1} parent=1 // pred_region
      %s24 = ssub.s32 32, 32
      %25 = vsyncadd [#allocation3], %s24
      %s27 = sshll.u32 [#allocation2], 4
      %s28 = int_to_ptr.vmem [resolvable:$true] %s27
      %30 = dma.hbm_to_vmem [thread:$0]  %s2, 32, %s28, [#allocation3]
    $region13: #{encoder_forward.1} parent=1 // pred_fallthru
      _
    // Predicated region
    $region14: #{encoder_forward.1} parent=1 // pred_check
      _
    $region15: #{encoder_forward.1} parent=1 // pred_check_branch
      %32 = sbr.rel (0) target = $region17
    $region16: #{encoder_forward.1} parent=1 // pred_region
      %s34 = ssub.s32 4096, 4096
      %35 = vsyncadd [#allocation6], %s34
      %s36 = sshll.u32 [#allocation5], 4
      %s37 = int_to_ptr.vmem [resolvable:$true] %s36
      %42 = dma.hbm_to_vmem [thread:$0]  %s3, 4096, %s37, [#allocation6], 128, 128, 8
    $region17: #{encoder_forward.1} parent=1 // pred_fallthru
      _
    // Predicated region
    $region18: #{encoder_forward.1} parent=1 // pred_check
      _
    $region19: #{encoder_forward.1} parent=1 // pred_check_branch
      %44 = sbr.rel (0) target = $region21
    $region20: #{encoder_forward.1} parent=1 // pred_region
      _
    $region21: #{encoder_forward.1} parent=1 // pred_fallthru
      _
    // Predicated region
    $region22: #{encoder_forward.1} parent=1 // pred_check
      _
    $region23: #{encoder_forward.1} parent=1 // pred_check_branch
      %46 = sbr.rel (0) target = $region25
    $region24: #{encoder_forward.1} parent=1 // pred_region
      %s48 = ssub.s32 2048, 2048
      %49 = vsyncadd [#allocation6], %s48
      %s50 = sshll.u32 [#allocation7], 4
      %s51 = int_to_ptr.vmem [resolvable:$true] %s50
      %56 = dma.hbm_to_vmem [thread:$0]  %s5, 2048, %s51, [#allocation6], 128, 128, 8
    $region25: #{encoder_forward.1} parent=1 // pred_fallthru
      _
    // Predicated region
    $region26: #{encoder_forward.1} parent=1 // pred_check
      _
    $region27: #{encoder_forward.1} parent=1 // pred_check_branch
      %58 = sbr.rel (0) target = $region29
    $region28: #{encoder_forward.1} parent=1 // pred_region
      _
    $region29: #{encoder_forward.1} parent=1 // pred_fallthru
      _
    // Predicated region
    $region30: #{encoder_forward.1} parent=1 // pred_check
      _
    $region31: #{encoder_forward.1} parent=1 // pred_check_branch
      %60 = sbr.rel (0) target = $region33
    $region32: #{encoder_forward.1} parent=1 // pred_region
      %61 = dma.done [#allocation3], 32
    $region33: #{encoder_forward.1} parent=1 // pred_fallthru
      _
    // Predicated region
    $region34: #{encoder_forward.1} parent=1 // pred_check
      _
    $region35: #{encoder_forward.1} parent=1 // pred_check_branch
      %63 = sbr.rel (0) target = $region37
    $region36: #{encoder_forward.1} parent=1 // pred_region
      %64 = dma.done [#allocation6], 4096
    $region37: #{encoder_forward.1} parent=1 // pred_fallthru
      _
    // Predicated region
    $region38: #{encoder_forward.1} parent=1 // pred_check
      _
    $region39: #{encoder_forward.1} parent=1 // pred_check_branch
      %66 = sbr.rel (0) target = $region41
    $region40: #{encoder_forward.1} parent=1 // pred_region
      %67 = dma.done [#allocation6], 2048
    $region41: #{encoder_forward.1} parent=1 // pred_fallthru
      _
    %v69 = vld [vmem:[%s6] sm:$0x1]
    %v70 = vld [vmem:[%s6 + $0x1] sm:$0x1]
    %v71 = vld [vmem:[%s6 + $0x2] sm:$0x1]
    %v72 = vld [vmem:[%s6 + $0x3] sm:$0x1]
    %v73 = vld [vmem:[%s6 + $0x4] sm:$0x1]
    %v74 = vld [vmem:[%s0] sm:$0xf]
    %v75 = vmul.f32 %v74, 2.0
    %v76 = vsub.f32 %v75, 1.0
    %v79 = vunpack.c.l.s4 1983009808
    %v80 = vunpack.c.0.s8 %v79
    %v81 = vlaneseq
    %v82 = vshrl.u32 %v81, 7
    %v83 = vsub.s32 %v80, %v82
    %v84 = vrot.slane %v76, %v83
    %v85 = vcombine.high %v84, %v84
    %v88 = vpack.c.bf16 %v84, %v84
    %v89 = vpack.c.bf16 %v85, %v85
    %v90 = vld [vmem:[#allocation5] sm:$0xf]
    %v91 = vld [vmem:[#allocation5 + $0x8] sm:$0xf]
    %v92 = vld [vmem:[#allocation5 + $0x10] sm:$0xf]
    %v93 = vld [vmem:[#allocation5 + $0x18] sm:$0xf]
    %v94 = vld [vmem:[#allocation5 + $0x20] sm:$0xf]
    %v95 = vld [vmem:[#allocation5 + $0x28] sm:$0xf]
    %v96 = vld [vmem:[#allocation5 + $0x30] sm:$0xf]
    %v97 = vld [vmem:[#allocation5 + $0x38] sm:$0xf]
    %v98 = vld [vmem:[#allocation5 + $0x40] sm:$0xf]
    %v99 = vld [vmem:[#allocation5 + $0x48] sm:$0xf]
    %v100 = vld [vmem:[#allocation5 + $0x50] sm:$0xf]
    %v101 = vld [vmem:[#allocation5 + $0x58] sm:$0xf]
    %v102 = vld [vmem:[#allocation5 + $0x60] sm:$0xf]
    %v103 = vld [vmem:[#allocation5 + $0x68] sm:$0xf]
    %v104 = vld [vmem:[#allocation5 + $0x70] sm:$0xf]
    %v105 = vld [vmem:[#allocation5 + $0x78] sm:$0xf]
    %v106 = vld [vmem:[#allocation5 + $0x80] sm:$0xf]
    %v107 = vld [vmem:[#allocation5 + $0x88] sm:$0xf]
    %v108 = vld [vmem:[#allocation5 + $0x90] sm:$0xf]
    %v109 = vld [vmem:[#allocation5 + $0x98] sm:$0xf]
    %v110 = vld [vmem:[#allocation5 + $0xa0] sm:$0xf]
    %v111 = vld [vmem:[#allocation5 + $0xa8] sm:$0xf]
    %v112 = vld [vmem:[#allocation5 + $0xb0] sm:$0xf]
    %v113 = vld [vmem:[#allocation5 + $0xb8] sm:$0xf]
    %v114 = vld [vmem:[#allocation5 + $0xc0] sm:$0xf]
    %v115 = vld [vmem:[#allocation5 + $0xc8] sm:$0xf]
    %v116 = vld [vmem:[#allocation5 + $0xd0] sm:$0xf]
    %v117 = vld [vmem:[#allocation5 + $0xd8] sm:$0xf]
    %v118 = vld [vmem:[#allocation5 + $0xe0] sm:$0xf]
    %v119 = vld [vmem:[#allocation5 + $0xe8] sm:$0xf]
    %v120 = vld [vmem:[#allocation5 + $0xf0] sm:$0xf]
    %v121 = vld [vmem:[#allocation5 + $0xf8] sm:$0xf]
    %v122 = vlaneseq
    %v123 = vshrl.u32 %v122, 7
    %v124 = vsub.s32 0, %v123
    %v125 = vrot.slane %v69, %v124
    %v158 = vunpack.c.l.b16 %v90
    %v159 = vunpack.c.l.b16 %v91
    %v160 = vunpack.c.l.b16 %v92
    %v161 = vunpack.c.l.b16 %v93
    %v162 = vunpack.c.l.b16 %v94
    %v163 = vunpack.c.l.b16 %v95
    %v164 = vunpack.c.l.b16 %v96
    %v165 = vunpack.c.l.b16 %v97
    %v166 = vunpack.c.l.b16 %v98
    %v167 = vunpack.c.l.b16 %v99
    %v168 = vunpack.c.l.b16 %v100
    %v169 = vunpack.c.l.b16 %v101
    %v170 = vunpack.c.l.b16 %v102
    %v171 = vunpack.c.l.b16 %v103
    %v172 = vunpack.c.l.b16 %v104
    %v173 = vunpack.c.l.b16 %v105
    %v174 = vunpack.c.l.b16 %v106
    %v175 = vunpack.c.l.b16 %v107
    %v176 = vunpack.c.l.b16 %v108
    %v177 = vunpack.c.l.b16 %v109
    %v178 = vunpack.c.l.b16 %v110
    %v179 = vunpack.c.l.b16 %v111
    %v180 = vunpack.c.l.b16 %v112
    %v181 = vunpack.c.l.b16 %v113
    %v182 = vunpack.c.l.b16 %v114
    %v183 = vunpack.c.l.b16 %v115
    %v184 = vunpack.c.l.b16 %v116
    %v185 = vunpack.c.l.b16 %v117
    %v186 = vunpack.c.l.b16 %v118
    %v187 = vunpack.c.l.b16 %v119
    %v188 = vunpack.c.l.b16 %v120
    %v189 = vunpack.c.l.b16 %v121
    %v190 = vpack.c.b16 %v159, %v158
    %v191 = vpack.c.b16 %v161, %v160
    %v192 = vpack.c.b16 %v163, %v162
    %v193 = vpack.c.b16 %v165, %v164
    %v194 = vpack.c.b16 %v167, %v166
    %v195 = vpack.c.b16 %v169, %v168
    %v196 = vpack.c.b16 %v171, %v170
    %v197 = vpack.c.b16 %v173, %v172
    %v198 = vpack.c.b16 %v175, %v174
    %v199 = vpack.c.b16 %v177, %v176
    %v200 = vpack.c.b16 %v179, %v178
    %v201 = vpack.c.b16 %v181, %v180
    %v202 = vpack.c.b16 %v183, %v182
    %v203 = vpack.c.b16 %v185, %v184
    %v204 = vpack.c.b16 %v187, %v186
    %v205 = vpack.c.b16 %v189, %v188
    %222 = vmatprep.subr.bf16.mxu0 0
    %223 = vmatpush1.bf16.msra.mxu0 %v197
    %224 = vmatprep.subr.bf16.mxu0 0
    %225 = vmatpush1.bf16.msra.mxu0 %v196
    %226 = vmatprep.subr.bf16.mxu0 0
    %227 = vmatpush1.bf16.msra.mxu0 %v195
    %228 = vmatprep.subr.bf16.mxu0 0
    %229 = vmatpush1.bf16.msra.mxu0 %v194
    %230 = vmatprep.subr.bf16.mxu0 0
    %231 = vmatpush1.bf16.msra.mxu0 %v193
    %232 = vmatprep.subr.bf16.mxu0 0
    %233 = vmatpush1.bf16.msra.mxu0 %v192
    %234 = vmatprep.subr.bf16.mxu0 0
    %235 = vmatpush1.bf16.msra.mxu0 %v191
    %236 = vmatprep.subr.bf16.mxu0 0
    %237 = vmatpush1.bf16.msra.mxu0 %v190
    %238 = vmatprep.subr.bf16.mxu0 0
    %239 = vmatpush2.bf16.msra.mxu0 %v205
    %240 = vmatprep.subr.bf16.mxu0 0
    %241 = vmatpush2.bf16.msra.mxu0 %v204
    %242 = vmatprep.subr.bf16.mxu0 0
    %243 = vmatpush2.bf16.msra.mxu0 %v203
    %244 = vmatprep.subr.bf16.mxu0 0
    %245 = vmatpush2.bf16.msra.mxu0 %v202
    %246 = vmatprep.subr.bf16.mxu0 0
    %247 = vmatpush2.bf16.msra.mxu0 %v201
    %248 = vmatprep.subr.bf16.mxu0 0
    %249 = vmatpush2.bf16.msra.mxu0 %v200
    %250 = vmatprep.subr.bf16.mxu0 0
    %251 = vmatpush2.bf16.msra.mxu0 %v199
    %252 = vmatprep.subr.bf16.mxu0 0
    %253 = vmatpush2.bf16.msra.mxu0 %v198
    %254 = vmatprep.mubr.bf16.mxu0 %v89
    %255 = vmatmul.mubr.bf16.gmra.mxu0 %v88
    %v256 = vpop.f32.mrf.mxu0
    %v257 = vadd.f32 %v125, %v256
    %v258 = vpop.f32.mrf.mxu0
    %v259 = vpop.f32.mrf.mxu0
    %v260 = vpop.f32.mrf.mxu0
    %261 = vdwg.mxu0
    %v262 = vmax.f32 %v257, 0.0
    %v263 = vand.u32 2147483647, %v257
    %v264 = vsub.f32 0.0, %v263
    %v265 = vmul.f32 %v264, 1.442695
    %v266 = vpow.pop %v265
    %v267 = vadd.f32 %v266, 1.0
    %v268 = vlog2.pop %v267
    %v269 = vmul.f32 %v268, 0.6931472
    %v270 = vmul.f32 -0.5, %v266
    %v271 = vadd.f32 %v270, 1.0
    %v272 = vmul.f32 %v271, %v266
    %v273 = vand.u32 2147483647, %v266
    %vm274 = vcmp.lt.f32.partialorder %v273, 0.0004427343
    %v275 = vsel %vm274, %v272, %v269
    %v276 = vadd.f32 %v262, %v275
    %v277 = vld [vmem:[%s1] sm:$0x3]
    %v278 = vpack.c.bf16 %v277, %v277
    %v279 = vld [vmem:[%s4] sm:$0xf]
    %v280 = vld [vmem:[%s4 + $0x4] sm:$0xf]
    %v281 = vld [vmem:[%s4 + $0x8] sm:$0xf]
    %v282 = vld [vmem:[%s4 + $0xc] sm:$0xf]
    %v283 = vld [vmem:[%s4 + $0x10] sm:$0xf]
    %v284 = vld [vmem:[%s4 + $0x14] sm:$0xf]
    %v285 = vld [vmem:[%s4 + $0x18] sm:$0xf]
    %v286 = vld [vmem:[%s4 + $0x1c] sm:$0xf]
    %v287 = vlaneseq
    %v288 = vshrl.u32 %v287, 7
    %v289 = vsub.s32 0, %v288
    %v290 = vrot.slane %v70, %v289
    %v299 = vunpack.c.l.b16 %v279
    %v300 = vunpack.c.l.b16 %v280
    %v301 = vunpack.c.l.b16 %v281
    %v302 = vunpack.c.l.b16 %v282
    %v303 = vunpack.c.l.b16 %v283
    %v304 = vunpack.c.l.b16 %v284
    %v305 = vunpack.c.l.b16 %v285
    %v306 = vunpack.c.l.b16 %v286
    %v307 = vpack.c.b16 %v300, %v299
    %v308 = vpack.c.b16 %v302, %v301
    %v309 = vpack.c.b16 %v304, %v303
    %v310 = vpack.c.b16 %v306, %v305
    %vm315 = vcmask 523264
    %v317 = vsel %vm315, %v278, 0
    %319 = vmatprep.subr.bf16.mxu0 0
    %320 = vmatpush1.bf16.msra.mxu0 0
    %321 = vmatprep.subr.bf16.mxu0 0
    %322 = vmatpush1.bf16.msra.mxu0 0
    %323 = vmatprep.subr.bf16.mxu0 0
    %324 = vmatpush1.bf16.msra.mxu0 0
    %325 = vmatprep.subr.bf16.mxu0 0
    %326 = vmatpush1.bf16.msra.mxu0 0
    %327 = vmatprep.subr.bf16.mxu0 0
    %328 = vmatpush1.bf16.msra.mxu0 %v310
    %329 = vmatprep.subr.bf16.mxu0 0
    %330 = vmatpush1.bf16.msra.mxu0 %v309
    %331 = vmatprep.subr.bf16.mxu0 0
    %332 = vmatpush1.bf16.msra.mxu0 %v308
    %333 = vmatprep.subr.bf16.mxu0 0
    %334 = vmatpush1.bf16.msra.mxu0 %v307
    %335 = vmatprep.subr.bf16.mxu0 0
    %336 = vmatpush2.bf16.msra.mxu0 0
    %337 = vmatprep.subr.bf16.mxu0 0
    %338 = vmatpush2.bf16.msra.mxu0 0
    %339 = vmatprep.subr.bf16.mxu0 0
    %340 = vmatpush2.bf16.msra.mxu0 0
    %341 = vmatprep.subr.bf16.mxu0 0
    %342 = vmatpush2.bf16.msra.mxu0 0
    %343 = vmatprep.subr.bf16.mxu0 0
    %344 = vmatpush2.bf16.msra.mxu0 0
    %345 = vmatprep.subr.bf16.mxu0 0
    %346 = vmatpush2.bf16.msra.mxu0 0
    %347 = vmatprep.subr.bf16.mxu0 0
    %348 = vmatpush2.bf16.msra.mxu0 0
    %349 = vmatprep.subr.bf16.mxu0 0
    %350 = vmatpush2.bf16.msra.mxu0 0
    %351 = vmatprep.mubr.bf16.mxu0 0
    %352 = vmatmul.mubr.bf16.gmra.mxu0 %v317
    %v353 = vpop.f32.mrf.mxu0
    %v354 = vadd.f32 %v290, %v353
    %v355 = vpop.f32.mrf.mxu0
    %v356 = vpop.f32.mrf.mxu0
    %v357 = vpop.f32.mrf.mxu0
    %358 = vdwg.mxu0
    %v359 = vmax.f32 %v354, 0.0
    %v360 = vand.u32 2147483647, %v354
    %v361 = vsub.f32 0.0, %v360
    %v362 = vmul.f32 %v361, 1.442695
    %v363 = vpow.pop %v362
    %v364 = vadd.f32 %v363, 1.0
    %v365 = vlog2.pop %v364
    %v366 = vmul.f32 %v365, 0.6931472
    %v367 = vmul.f32 -0.5, %v363
    %v368 = vadd.f32 %v367, 1.0
    %v369 = vmul.f32 %v368, %v363
    %v370 = vand.u32 2147483647, %v363
    %vm371 = vcmp.lt.f32.partialorder %v370, 0.0004427343
    %v372 = vsel %vm371, %v369, %v366
    %v373 = vadd.f32 %v359, %v372
    %v374 = vpack.c.bf16 %v276, %v276
    %v375 = vpack.c.bf16 %v373, %v373
    %v376 = vld [vmem:[#allocation5 + $0x4] sm:$0xf]
    %v377 = vld [vmem:[#allocation5 + $0xc] sm:$0xf]
    %v378 = vld [vmem:[#allocation5 + $0x14] sm:$0xf]
    %v379 = vld [vmem:[#allocation5 + $0x1c] sm:$0xf]
    %v380 = vld [vmem:[#allocation5 + $0x24] sm:$0xf]
    %v381 = vld [vmem:[#allocation5 + $0x2c] sm:$0xf]
    %v382 = vld [vmem:[#allocation5 + $0x34] sm:$0xf]
    %v383 = vld [vmem:[#allocation5 + $0x3c] sm:$0xf]
    %v384 = vld [vmem:[#allocation5 + $0x44] sm:$0xf]
    %v385 = vld [vmem:[#allocation5 + $0x4c] sm:$0xf]
    %v386 = vld [vmem:[#allocation5 + $0x54] sm:$0xf]
    %v387 = vld [vmem:[#allocation5 + $0x5c] sm:$0xf]
    %v388 = vld [vmem:[#allocation5 + $0x64] sm:$0xf]
    %v389 = vld [vmem:[#allocation5 + $0x6c] sm:$0xf]
    %v390 = vld [vmem:[#allocation5 + $0x74] sm:$0xf]
    %v391 = vld [vmem:[#allocation5 + $0x7c] sm:$0xf]
    %v392 = vld [vmem:[#allocation5 + $0x84] sm:$0xf]
    %v393 = vld [vmem:[#allocation5 + $0x8c] sm:$0xf]
    %v394 = vld [vmem:[#allocation5 + $0x94] sm:$0xf]
    %v395 = vld [vmem:[#allocation5 + $0x9c] sm:$0xf]
    %v396 = vld [vmem:[#allocation5 + $0xa4] sm:$0xf]
    %v397 = vld [vmem:[#allocation5 + $0xac] sm:$0xf]
    %v398 = vld [vmem:[#allocation5 + $0xb4] sm:$0xf]
    %v399 = vld [vmem:[#allocation5 + $0xbc] sm:$0xf]
    %v400 = vld [vmem:[#allocation5 + $0xc4] sm:$0xf]
    %v401 = vld [vmem:[#allocation5 + $0xcc] sm:$0xf]
    %v402 = vld [vmem:[#allocation5 + $0xd4] sm:$0xf]
    %v403 = vld [vmem:[#allocation5 + $0xdc] sm:$0xf]
    %v404 = vld [vmem:[#allocation5 + $0xe4] sm:$0xf]
    %v405 = vld [vmem:[#allocation5 + $0xec] sm:$0xf]
    %v406 = vld [vmem:[#allocation5 + $0xf4] sm:$0xf]
    %v407 = vld [vmem:[#allocation5 + $0xfc] sm:$0xf]
    %v408 = vlaneseq
    %v409 = vshrl.u32 %v408, 7
    %v410 = vsub.s32 0, %v409
    %v411 = vrot.slane %v71, %v410
    %v444 = vunpack.c.l.b16 %v376
    %v445 = vunpack.c.l.b16 %v377
    %v446 = vunpack.c.l.b16 %v378
    %v447 = vunpack.c.l.b16 %v379
    %v448 = vunpack.c.l.b16 %v380
    %v449 = vunpack.c.l.b16 %v381
    %v450 = vunpack.c.l.b16 %v382
    %v451 = vunpack.c.l.b16 %v383
    %v452 = vunpack.c.l.b16 %v384
    %v453 = vunpack.c.l.b16 %v385
    %v454 = vunpack.c.l.b16 %v386
    %v455 = vunpack.c.l.b16 %v387
    %v456 = vunpack.c.l.b16 %v388
    %v457 = vunpack.c.l.b16 %v389
    %v458 = vunpack.c.l.b16 %v390
    %v459 = vunpack.c.l.b16 %v391
    %v460 = vunpack.c.l.b16 %v392
    %v461 = vunpack.c.l.b16 %v393
    %v462 = vunpack.c.l.b16 %v394
    %v463 = vunpack.c.l.b16 %v395
    %v464 = vunpack.c.l.b16 %v396
    %v465 = vunpack.c.l.b16 %v397
    %v466 = vunpack.c.l.b16 %v398
    %v467 = vunpack.c.l.b16 %v399
    %v468 = vunpack.c.l.b16 %v400
    %v469 = vunpack.c.l.b16 %v401
    %v470 = vunpack.c.l.b16 %v402
    %v471 = vunpack.c.l.b16 %v403
    %v472 = vunpack.c.l.b16 %v404
    %v473 = vunpack.c.l.b16 %v405
    %v474 = vunpack.c.l.b16 %v406
    %v475 = vunpack.c.l.b16 %v407
    %v476 = vpack.c.b16 %v445, %v444
    %v477 = vpack.c.b16 %v447, %v446
    %v478 = vpack.c.b16 %v449, %v448
    %v479 = vpack.c.b16 %v451, %v450
    %v480 = vpack.c.b16 %v453, %v452
    %v481 = vpack.c.b16 %v455, %v454
    %v482 = vpack.c.b16 %v457, %v456
    %v483 = vpack.c.b16 %v459, %v458
    %v484 = vpack.c.b16 %v461, %v460
    %v485 = vpack.c.b16 %v463, %v462
    %v486 = vpack.c.b16 %v465, %v464
    %v487 = vpack.c.b16 %v467, %v466
    %v488 = vpack.c.b16 %v469, %v468
    %v489 = vpack.c.b16 %v471, %v470
    %v490 = vpack.c.b16 %v473, %v472
    %v491 = vpack.c.b16 %v475, %v474
    %508 = vmatprep.subr.bf16.mxu0 0
    %509 = vmatpush1.bf16.msra.mxu0 %v483
    %510 = vmatprep.subr.bf16.mxu0 0
    %511 = vmatpush1.bf16.msra.mxu0 %v482
    %512 = vmatprep.subr.bf16.mxu0 0
    %513 = vmatpush1.bf16.msra.mxu0 %v481
    %514 = vmatprep.subr.bf16.mxu0 0
    %515 = vmatpush1.bf16.msra.mxu0 %v480
    %516 = vmatprep.subr.bf16.mxu0 0
    %517 = vmatpush1.bf16.msra.mxu0 %v479
    %518 = vmatprep.subr.bf16.mxu0 0
    %519 = vmatpush1.bf16.msra.mxu0 %v478
    %520 = vmatprep.subr.bf16.mxu0 0
    %521 = vmatpush1.bf16.msra.mxu0 %v477
    %522 = vmatprep.subr.bf16.mxu0 0
    %523 = vmatpush1.bf16.msra.mxu0 %v476
    %524 = vmatprep.subr.bf16.mxu0 0
    %525 = vmatpush2.bf16.msra.mxu0 %v491
    %526 = vmatprep.subr.bf16.mxu0 0
    %527 = vmatpush2.bf16.msra.mxu0 %v490
    %528 = vmatprep.subr.bf16.mxu0 0
    %529 = vmatpush2.bf16.msra.mxu0 %v489
    %530 = vmatprep.subr.bf16.mxu0 0
    %531 = vmatpush2.bf16.msra.mxu0 %v488
    %532 = vmatprep.subr.bf16.mxu0 0
    %533 = vmatpush2.bf16.msra.mxu0 %v487
    %534 = vmatprep.subr.bf16.mxu0 0
    %535 = vmatpush2.bf16.msra.mxu0 %v486
    %536 = vmatprep.subr.bf16.mxu0 0
    %537 = vmatpush2.bf16.msra.mxu0 %v485
    %538 = vmatprep.subr.bf16.mxu0 0
    %539 = vmatpush2.bf16.msra.mxu0 %v484
    %540 = vmatprep.mubr.bf16.mxu0 %v375
    %541 = vmatmul.mubr.bf16.gmra.mxu0 %v374
    %v542 = vpop.f32.mrf.mxu0
    %v543 = vadd.f32 %v411, %v542
    %v544 = vpop.f32.mrf.mxu0
    %v545 = vpop.f32.mrf.mxu0
    %v546 = vpop.f32.mrf.mxu0
    %547 = vdwg.mxu0
    %v548 = vmax.f32 %v543, 0.0
    %v549 = vand.u32 2147483647, %v543
    %v550 = vsub.f32 0.0, %v549
    %v551 = vmul.f32 %v550, 1.442695
    %v552 = vpow.pop %v551
    %v553 = vadd.f32 %v552, 1.0
    %v554 = vlog2.pop %v553
    %v555 = vmul.f32 %v554, 0.6931472
    %v556 = vmul.f32 -0.5, %v552
    %v557 = vadd.f32 %v556, 1.0
    %v558 = vmul.f32 %v557, %v552
    %v559 = vand.u32 2147483647, %v552
    %vm560 = vcmp.lt.f32.partialorder %v559, 0.0004427343
    %v561 = vsel %vm560, %v558, %v555
    %v562 = vadd.f32 %v548, %v561
    %v563 = vpack.c.bf16 %v562, %v562
    %v564 = vld [vmem:[#allocation7] sm:$0xf]
    %v565 = vld [vmem:[#allocation7 + $0x8] sm:$0xf]
    %v566 = vld [vmem:[#allocation7 + $0x10] sm:$0xf]
    %v567 = vld [vmem:[#allocation7 + $0x18] sm:$0xf]
    %v568 = vld [vmem:[#allocation7 + $0x20] sm:$0xf]
    %v569 = vld [vmem:[#allocation7 + $0x28] sm:$0xf]
    %v570 = vld [vmem:[#allocation7 + $0x30] sm:$0xf]
    %v571 = vld [vmem:[#allocation7 + $0x38] sm:$0xf]
    %v572 = vld [vmem:[#allocation7 + $0x40] sm:$0xf]
    %v573 = vld [vmem:[#allocation7 + $0x48] sm:$0xf]
    %v574 = vld [vmem:[#allocation7 + $0x50] sm:$0xf]
    %v575 = vld [vmem:[#allocation7 + $0x58] sm:$0xf]
    %v576 = vld [vmem:[#allocation7 + $0x60] sm:$0xf]
    %v577 = vld [vmem:[#allocation7 + $0x68] sm:$0xf]
    %v578 = vld [vmem:[#allocation7 + $0x70] sm:$0xf]
    %v579 = vld [vmem:[#allocation7 + $0x78] sm:$0xf]
    %v580 = vlaneseq
    %v581 = vshrl.u32 %v580, 7
    %v582 = vsub.s32 0, %v581
    %v583 = vrot.slane %v72, %v582
    %v600 = vunpack.c.l.b16 %v564
    %v601 = vunpack.c.l.b16 %v565
    %v602 = vunpack.c.l.b16 %v566
    %v603 = vunpack.c.l.b16 %v567
    %v604 = vunpack.c.l.b16 %v568
    %v605 = vunpack.c.l.b16 %v569
    %v606 = vunpack.c.l.b16 %v570
    %v607 = vunpack.c.l.b16 %v571
    %v608 = vunpack.c.l.b16 %v572
    %v609 = vunpack.c.l.b16 %v573
    %v610 = vunpack.c.l.b16 %v574
    %v611 = vunpack.c.l.b16 %v575
    %v612 = vunpack.c.l.b16 %v576
    %v613 = vunpack.c.l.b16 %v577
    %v614 = vunpack.c.l.b16 %v578
    %v615 = vunpack.c.l.b16 %v579
    %v616 = vpack.c.b16 %v601, %v600
    %v617 = vpack.c.b16 %v603, %v602
    %v618 = vpack.c.b16 %v605, %v604
    %v619 = vpack.c.b16 %v607, %v606
    %v620 = vpack.c.b16 %v609, %v608
    %v621 = vpack.c.b16 %v611, %v610
    %v622 = vpack.c.b16 %v613, %v612
    %v623 = vpack.c.b16 %v615, %v614
    %632 = vmatprep.subr.bf16.mxu0 0
    %633 = vmatpush1.bf16.msra.mxu0 %v623
    %634 = vmatprep.subr.bf16.mxu0 0
    %635 = vmatpush1.bf16.msra.mxu0 %v622
    %636 = vmatprep.subr.bf16.mxu0 0
    %637 = vmatpush1.bf16.msra.mxu0 %v621
    %638 = vmatprep.subr.bf16.mxu0 0
    %639 = vmatpush1.bf16.msra.mxu0 %v620
    %640 = vmatprep.subr.bf16.mxu0 0
    %641 = vmatpush1.bf16.msra.mxu0 %v619
    %642 = vmatprep.subr.bf16.mxu0 0
    %643 = vmatpush1.bf16.msra.mxu0 %v618
    %644 = vmatprep.subr.bf16.mxu0 0
    %645 = vmatpush1.bf16.msra.mxu0 %v617
    %646 = vmatprep.subr.bf16.mxu0 0
    %647 = vmatpush1.bf16.msra.mxu0 %v616
    %648 = vmatprep.subr.bf16.mxu0 0
    %649 = vmatpush2.bf16.msra.mxu0 0
    %650 = vmatprep.subr.bf16.mxu0 0
    %651 = vmatpush2.bf16.msra.mxu0 0
    %652 = vmatprep.subr.bf16.mxu0 0
    %653 = vmatpush2.bf16.msra.mxu0 0
    %654 = vmatprep.subr.bf16.mxu0 0
    %655 = vmatpush2.bf16.msra.mxu0 0
    %656 = vmatprep.subr.bf16.mxu0 0
    %657 = vmatpush2.bf16.msra.mxu0 0
    %658 = vmatprep.subr.bf16.mxu0 0
    %659 = vmatpush2.bf16.msra.mxu0 0
    %660 = vmatprep.subr.bf16.mxu0 0
    %661 = vmatpush2.bf16.msra.mxu0 0
    %662 = vmatprep.subr.bf16.mxu0 0
    %663 = vmatpush2.bf16.msra.mxu0 0
    %664 = vmatprep.mubr.bf16.mxu0 0
    %665 = vmatmul.mubr.bf16.gmra.mxu0 %v563
    %v666 = vpop.f32.mrf.mxu0
    %v667 = vadd.f32 %v583, %v666
    %v668 = vpop.f32.mrf.mxu0
    %v669 = vpop.f32.mrf.mxu0
    %v670 = vpop.f32.mrf.mxu0
    %671 = vdwg.mxu0
    %v672 = vmax.f32 %v667, 0.0
    %v673 = vand.u32 2147483647, %v667
    %v674 = vsub.f32 0.0, %v673
    %v675 = vmul.f32 %v674, 1.442695
    %v676 = vpow.pop %v675
    %v677 = vadd.f32 %v676, 1.0
    %v678 = vlog2.pop %v677
    %v679 = vmul.f32 %v678, 0.6931472
    %v680 = vmul.f32 -0.5, %v676
    %v681 = vadd.f32 %v680, 1.0
    %v682 = vmul.f32 %v681, %v676
    %v683 = vand.u32 2147483647, %v676
    %vm684 = vcmp.lt.f32.partialorder %v683, 0.0004427343
    %v685 = vsel %vm684, %v682, %v679
    %v686 = vadd.f32 %v672, %v685
    %v687 = vpack.c.bf16 %v686, %v686
    %v688 = vld [vmem:[#allocation7 + $0x4] sm:$0xf]
    %v689 = vld [vmem:[#allocation7 + $0xc] sm:$0xf]
    %v690 = vld [vmem:[#allocation7 + $0x14] sm:$0xf]
    %v691 = vld [vmem:[#allocation7 + $0x1c] sm:$0xf]
    %v692 = vld [vmem:[#allocation7 + $0x24] sm:$0xf]
    %v693 = vld [vmem:[#allocation7 + $0x2c] sm:$0xf]
    %v694 = vld [vmem:[#allocation7 + $0x34] sm:$0xf]
    %v695 = vld [vmem:[#allocation7 + $0x3c] sm:$0xf]
    %v696 = vld [vmem:[#allocation7 + $0x44] sm:$0xf]
    %v697 = vld [vmem:[#allocation7 + $0x4c] sm:$0xf]
    %v698 = vld [vmem:[#allocation7 + $0x54] sm:$0xf]
    %v699 = vld [vmem:[#allocation7 + $0x5c] sm:$0xf]
    %v700 = vld [vmem:[#allocation7 + $0x64] sm:$0xf]
    %v701 = vld [vmem:[#allocation7 + $0x6c] sm:$0xf]
    %v702 = vld [vmem:[#allocation7 + $0x74] sm:$0xf]
    %v703 = vld [vmem:[#allocation7 + $0x7c] sm:$0xf]
    %v704 = vlaneseq
    %v705 = vshrl.u32 %v704, 7
    %v706 = vsub.s32 0, %v705
    %v707 = vrot.slane %v73, %v706
    %v724 = vunpack.c.l.b16 %v688
    %v725 = vunpack.c.l.b16 %v689
    %v726 = vunpack.c.l.b16 %v690
    %v727 = vunpack.c.l.b16 %v691
    %v728 = vunpack.c.l.b16 %v692
    %v729 = vunpack.c.l.b16 %v693
    %v730 = vunpack.c.l.b16 %v694
    %v731 = vunpack.c.l.b16 %v695
    %v732 = vunpack.c.l.b16 %v696
    %v733 = vunpack.c.l.b16 %v697
    %v734 = vunpack.c.l.b16 %v698
    %v735 = vunpack.c.l.b16 %v699
    %v736 = vunpack.c.l.b16 %v700
    %v737 = vunpack.c.l.b16 %v701
    %v738 = vunpack.c.l.b16 %v702
    %v739 = vunpack.c.l.b16 %v703
    %v740 = vpack.c.b16 %v725, %v724
    %v741 = vpack.c.b16 %v727, %v726
    %v742 = vpack.c.b16 %v729, %v728
    %v743 = vpack.c.b16 %v731, %v730
    %v744 = vpack.c.b16 %v733, %v732
    %v745 = vpack.c.b16 %v735, %v734
    %v746 = vpack.c.b16 %v737, %v736
    %v747 = vpack.c.b16 %v739, %v738
    %756 = vmatprep.subr.bf16.mxu0 0
    %757 = vmatpush1.bf16.msra.mxu0 %v747
    %758 = vmatprep.subr.bf16.mxu0 0
    %759 = vmatpush1.bf16.msra.mxu0 %v746
    %760 = vmatprep.subr.bf16.mxu0 0
    %761 = vmatpush1.bf16.msra.mxu0 %v745
    %762 = vmatprep.subr.bf16.mxu0 0
    %763 = vmatpush1.bf16.msra.mxu0 %v744
    %764 = vmatprep.subr.bf16.mxu0 0
    %765 = vmatpush1.bf16.msra.mxu0 %v743
    %766 = vmatprep.subr.bf16.mxu0 0
    %767 = vmatpush1.bf16.msra.mxu0 %v742
    %768 = vmatprep.subr.bf16.mxu0 0
    %769 = vmatpush1.bf16.msra.mxu0 %v741
    %770 = vmatprep.subr.bf16.mxu0 0
    %771 = vmatpush1.bf16.msra.mxu0 %v740
    %772 = vmatprep.subr.bf16.mxu0 0
    %773 = vmatpush2.bf16.msra.mxu0 0
    %774 = vmatprep.subr.bf16.mxu0 0
    %775 = vmatpush2.bf16.msra.mxu0 0
    %776 = vmatprep.subr.bf16.mxu0 0
    %777 = vmatpush2.bf16.msra.mxu0 0
    %778 = vmatprep.subr.bf16.mxu0 0
    %779 = vmatpush2.bf16.msra.mxu0 0
    %780 = vmatprep.subr.bf16.mxu0 0
    %781 = vmatpush2.bf16.msra.mxu0 0
    %782 = vmatprep.subr.bf16.mxu0 0
    %783 = vmatpush2.bf16.msra.mxu0 0
    %784 = vmatprep.subr.bf16.mxu0 0
    %785 = vmatpush2.bf16.msra.mxu0 0
    %786 = vmatprep.subr.bf16.mxu0 0
    %787 = vmatpush2.bf16.msra.mxu0 0
    %788 = vmatprep.mubr.bf16.mxu0 0
    %789 = vmatmul.mubr.bf16.gmra.mxu0 %v687
    %v790 = vpop.f32.mrf.mxu0
    %v791 = vadd.f32 %v707, %v790
    %v792 = vpop.f32.mrf.mxu0
    %v793 = vpop.f32.mrf.mxu0
    %v794 = vpop.f32.mrf.mxu0
    %795 = vdwg.mxu0
    %v796 = vld [vmem:[#allocation2] sm:$0x3]
    %v797 = vmul.f32 %v791, 0.5
    %v798 = vmul.f32 %v797, 1.442695
    %v799 = vpow.pop %v798
    %801 = vrot.lane.b32.xlu0 %v796, 32
    %v802 = vpop.permute.xlu0 %801
    %v804 = vmul.f32 %v799, %v802
    %806 = vrot.lane.b32.xlu0 %v804, 96
    %v807 = vpop.permute.xlu0 %806
    %v809 = vadd.f32 %v791, %v807
    %811 = vrot.lane.b32.xlu0 %v809, 64
    %v812 = vpop.permute.xlu0 %811
    %814 = vrot.lane.b32.xlu0 %v796, 96
    %v815 = vpop.permute.xlu0 %814
    %v817 = vsel %vm315, %v791, %v812
    %vm818 = vcmask 785408
    %v819 = vsel %vm818, %v817, %v815
    %820 = vst [vmem:[%s7] sm:$0x3] %v819
    %821 = vst [vmem:[#allocation8] sm:$0x3] %v686
    // Predicated region
    $region42: #{encoder_forward.1} parent=1 // pred_check
      _
    $region43: #{encoder_forward.1} parent=1 // pred_check_branch
      %823 = sbr.rel (0) target = $region45
    $region44: #{encoder_forward.1} parent=1 // pred_region
      _
    $region45: #{encoder_forward.1} parent=1 // pred_fallthru
      _
    // Predicated region
    $region46: #{encoder_forward.1} parent=1 // pred_check
      _
    $region47: #{encoder_forward.1} parent=1 // pred_check_branch
      %825 = sbr.rel (0) target = $region49
    $region48: #{encoder_forward.1} parent=1 // pred_region
      %s827 = ssub.s32 32, 32
      %828 = vsyncadd [#allocation4], %s827
      %s830 = sshll.u32 [#allocation8], 4
      %s831 = int_to_ptr.vmem [resolvable:$true] %s830
      %833 = dma.vmem_to_hbm [thread:$0]  %s831, 32, %s8, [#allocation4]
    $region49: #{encoder_forward.1} parent=1 // pred_fallthru
      _
    // Predicated region
    $region50: #{encoder_forward.1} parent=1 // pred_check
      _
    $region51: #{encoder_forward.1} parent=1 // pred_check_branch
      %835 = sbr.rel (0) target = $region53
    $region52: #{encoder_forward.1} parent=1 // pred_region
      _
    $region53: #{encoder_forward.1} parent=1 // pred_fallthru
      _
    // Predicated region
    $region54: #{encoder_forward.1} parent=1 // pred_check
      _
    $region55: #{encoder_forward.1} parent=1 // pred_check_branch
      %837 = sbr.rel (0) target = $region57
    $region56: #{encoder_forward.1} parent=1 // pred_region
      %838 = dma.done [#allocation4], 32
    $region57: #{encoder_forward.1} parent=1 // pred_fallthru
      _
    %839 = vsyncpa [#allocation3], 1
    %840 = vsyncpa [#allocation6], 1
    %841 = vsyncpa [#allocation4], 1

</llo_original>
